<compile_context>
chip_gen: v6e
topology: v6e:2x2x1
jax: 0.10.0
libtpu: 0.0.40
codegen_flags: <defaults>
</compile_context>

<pallas_src>
import jax
import jax.numpy as jnp
from jax.experimental import pallas as pl
from jax.experimental.pallas import tpu as pltpu

LANES = 128
SUBLANES = 8
_MIN_TILE = LANES * SUBLANES  # 1024 elements -> (8, 128) tileable slab


def _view_copy_kernel(x_ref, o_ref):
    # pure pass-through: View has no compute
    o_ref[...] = x_ref[...]


def _resolve_size(numel, size):
    """torch.view-style size resolution (single -1 allowed)."""
    size = tuple(int(s) for s in size)
    if size.count(-1) > 1:
        raise ValueError("only one dimension may be -1")
    if -1 in size:
        known = 1
        for s in size:
            if s != -1:
                known *= s
        missing = numel // known
        assert known * missing == numel, "shape incompatible with number of elements"
        size = tuple(missing if s == -1 else s for s in size)
    else:
        prod = 1
        for s in size:
            prod *= s
        assert prod == numel, "shape incompatible with number of elements"
    return size


def _identity_copy_2d(x2d, tile_rows):
    rows, lanes = x2d.shape
    tr = min(tile_rows, rows)
    if tr != rows:
        # block's second-to-last dim must be a multiple of 8 (or the full dim)
        tr = max((tr // SUBLANES) * SUBLANES, SUBLANES)
    grid = (pl.cdiv(rows, tr),)  # ragged last block is masked by Pallas
    return pl.pallas_call(
        _view_copy_kernel,
        out_shape=jax.ShapeDtypeStruct((rows, lanes), x2d.dtype),
        grid=grid,
        in_specs=[pl.BlockSpec((tr, lanes), lambda i: (i, 0))],
        out_specs=pl.BlockSpec((tr, lanes), lambda i: (i, 0)),
        compiler_params=pltpu.CompilerParams(
            dimension_semantics=("parallel",),
            # 4 MiB blocks, double-buffered in+out = ~16 MiB; give headroom,
            # stays within scoped/physical VMEM on v5e / v6e / v7x.
            vmem_limit_bytes=32 << 20,
        ),
    )(x2d)


def view(x, size, *, target_block_bytes=4 << 20):
    """PyTorch-style View: return x's data reshaped to `size` via a Pallas copy."""
    n = x.size
    out_shape = _resolve_size(n, size)
    itemsize = jnp.dtype(x.dtype).itemsize
    # rows per block sized to ~target_block_bytes (mem-bound roofline territory)
    tile_rows = max(SUBLANES, target_block_bytes // (LANES * itemsize))

    if n % _MIN_TILE == 0:
        # Fast path (typical NCHW conv shapes): zero extra HBM passes — the
        # reshape of contiguous data to a (rows, 128) slab is free metadata.
        rows = n // LANES
        y2d = _identity_copy_2d(x.reshape(rows, LANES), tile_rows)
        return y2d.reshape(out_shape)

    # Ragged fallback: pad the flat tail to a tile boundary, copy, slice it off.
    # TODO(synk): handle the tail with an in-kernel masked store instead of padding.
    pad_to = pl.cdiv(n, _MIN_TILE) * _MIN_TILE
    flat = jnp.pad(x.reshape(-1), (0, pad_to - n))
    y2d = _identity_copy_2d(flat.reshape(pad_to // LANES, LANES), tile_rows)
    return y2d.reshape(-1)[:n].reshape(out_shape)


if __name__ == "__main__":
    key = jax.random.PRNGKey(0)
    # NCHW input; View((2, -1)) flattens channel+spatial dims per batch element.
    x = jax.random.normal(key, (2, 4, 16, 16), dtype=jnp.float32)
    size = (2, -1)

    y = view(x, size)
    y = jax.block_until_ready(y)

    y_ref = x.reshape(2, -1)
    assert y.shape == y_ref.shape and y.dtype == x.dtype
    assert bool(jnp.array_equal(y, y_ref))

    # also exercise the ragged (non 1024-divisible) fallback path
    x2 = jax.random.normal(jax.random.PRNGKey(1), (3, 5, 7), dtype=jnp.float32)
    y2 = jax.block_until_ready(view(x2, (7, 15)))
    assert bool(jnp.array_equal(y2, x2.reshape(7, 15)))

    print("KERNEL_OK")
</pallas_src>

<mosaic_0001>
module attributes {stable_mosaic.version = 11 : i64} {
  func.func @_view_copy_kernel(%arg0: i32, %arg1: memref<16x128xf32, #tpu.memory_space<vmem>>, %arg2: memref<16x128xf32, #tpu.memory_space<vmem>>) attributes {dimension_semantics = [#tpu.dimension_semantics<parallel>], iteration_bounds = array<i64: 1>, scalar_prefetch = 0 : i64, scratch_operands = 0 : i64, tpu.core_type = #tpu.core_type<tc>, window_params = [{transform_indices = @transform_0, window_bounds = array<i64: 16, 128>}, {transform_indices = @transform_1, window_bounds = array<i64: 16, 128>}]} {
    %c0 = arith.constant 0 : index
    %c0_0 = arith.constant 0 : index
    %0 = vector.load %arg1[%c0, %c0_0] : memref<16x128xf32, #tpu.memory_space<vmem>>, vector<16x128xf32>
    %c0_1 = arith.constant 0 : index
    %c0_2 = arith.constant 0 : index
    %1 = vector.load %arg2[%c0_1, %c0_2] : memref<16x128xf32, #tpu.memory_space<vmem>>, vector<16x128xf32>
    tpu.vector_store %arg2[%c0_1, %c0_2], %0 {strides = array<i32>} : memref<16x128xf32, #tpu.memory_space<vmem>>, vector<16x128xf32>,
    return
  }
  func.func @transform_0(%arg0: i32) -> (i32, i32) {
    %c0_i32 = arith.constant 0 : i32
    %c0_i32_0 = arith.constant 0 : i32
    return %arg0, %c0_i32 : i32, i32
  }
  func.func @transform_1(%arg0: i32) -> (i32, i32) {
    %c0_i32 = arith.constant 0 : i32
    %c0_i32_0 = arith.constant 0 : i32
    return %arg0, %c0_i32 : i32, i32
  }
}

</mosaic_0001>

<llo_original>
// kernel: tpu_custom_call.1
$region0: #{tpu_custom_call.1}
  #allocation0 [shape = 'u32[]', space=smem, size = 0x4, offset = 0x4, fixed_abs, tag = 'smem constant byte address 0x4 - core index']
  #allocation1 [shape = 'u32[144,128]{1,0:T(1,128)}', space=vmem, size = 0x12000, scoped, tag = 'internal scratch']
  %s0 = inlined_call_operand.hbm [shape: f32[16,128], index: 0, kind: input, shape index: {}]
  %s1 = inlined_call_operand.hbm [shape: f32[16,128], index: 1, kind: output, shape index: {}]
  %s2 = sld [smem:[#allocation0]]
  $region18: #{tpu_custom_call.1} parent=0
    _
  %s4 = ssub.s32 1, %s2
  %s5 = scalar_select 0, %s4, %s2
  $region1: #{tpu_custom_call.1} parent=0
    #allocation2 [shape = 'u8[8192]{0}', space=vmem, size = 0x2000, scoped, tag = 'input window, operand 0, single buffered']
    #allocation3 [shape = 's32[1]{0}', space=sflag, size = 0x4, scoped, tag = 'scoped memory for tpu_custom_call.1']
    #allocation4 [shape = 's32[1]{0}', space=sflag, size = 0x4, scoped, tag = 'scoped memory for tpu_custom_call.1']
    #allocation5 [shape = 'u8[8192]{0}', space=vmem, size = 0x2000, scoped, tag = 'output window, operand 0, single buffered']
    %6 = vsyncpa [#allocation3], 0
    %7 = vsyncpa [#allocation4], 0
    // Predicated region
    $region2: #{tpu_custom_call.1} parent=1 // pred_check
      _
    $region3: #{tpu_custom_call.1} parent=1 // pred_check_branch
      %9 = sbr.rel (0) target = $region5
    $region4: #{tpu_custom_call.1} parent=1 // pred_region
      %s11 = ssub.s32 256, 256
      %12 = vsyncadd [#allocation3], %s11
      %s13 = sshll.u32 [#allocation2], 4
      %s14 = int_to_ptr.vmem [resolvable:$true] %s13
      %19 = dma.hbm_to_vmem [thread:$0]  %s0, 256, %s14, [#allocation3], 128, 128, 8
    $region5: #{tpu_custom_call.1} parent=1 // pred_fallthru
      _
    // Predicated region
    $region6: #{tpu_custom_call.1} parent=1 // pred_check
      _
    $region7: #{tpu_custom_call.1} parent=1 // pred_check_branch
      %21 = sbr.rel (0) target = $region9
    $region8: #{tpu_custom_call.1} parent=1 // pred_region
      %22 = dma.done [#allocation3], 256
    $region9: #{tpu_custom_call.1} parent=1 // pred_fallthru
      _
    %v23 = vld [vmem:[#allocation2] sm:$0xff]
    %v24 = vld [vmem:[#allocation2 + $0x8] sm:$0xff]
    %25 = vst [vmem:[#allocation5] sm:$0xff] %v23
    %26 = vst [vmem:[#allocation5 + $0x8] sm:$0xff] %v24
    // Predicated region
    $region10: #{tpu_custom_call.1} parent=1 // pred_check
      _
    $region11: #{tpu_custom_call.1} parent=1 // pred_check_branch
      %28 = sbr.rel (0) target = $region13
    $region12: #{tpu_custom_call.1} parent=1 // pred_region
      %s30 = ssub.s32 256, 256
      %31 = vsyncadd [#allocation4], %s30
      %s32 = sshll.u32 [#allocation5], 4
      %s33 = int_to_ptr.vmem [resolvable:$true] %s32
      %38 = dma.vmem_to_hbm [thread:$0]  %s33, 256, %s1, [#allocation4], 128, 128, 8
    $region13: #{tpu_custom_call.1} parent=1 // pred_fallthru
      _
    // Predicated region
    $region14: #{tpu_custom_call.1} parent=1 // pred_check
      _
    $region15: #{tpu_custom_call.1} parent=1 // pred_check_branch
      %40 = sbr.rel (0) target = $region17
    $region16: #{tpu_custom_call.1} parent=1 // pred_region
      %41 = dma.done [#allocation4], 256
    $region17: #{tpu_custom_call.1} parent=1 // pred_fallthru
      _
    %42 = vsyncpa [#allocation3], 1
    %43 = vsyncpa [#allocation4], 1

</llo_original>
